<compile_context>
chip_gen: v5e
topology: v5e:2x2
jax: 0.10.0
libtpu: 0.0.40
codegen_flags: <defaults>
</compile_context>

<pallas_src>
import functools
import math

import jax
import jax.numpy as jnp
from jax import lax
from jax.experimental import pallas as pl
from jax.experimental.pallas import tpu as pltpu


# -----------------------------------------------------------------------------
# Small helpers
# -----------------------------------------------------------------------------
def _round_up(x, m):
    return ((x + m - 1) // m) * m


def _pick_tile(total, target, quantum=128):
    """Largest multiple of `quantum` <= target that divides `total`, else `total`."""
    if total % quantum != 0:
        return total
    t = min((target // quantum) * quantum, total)
    t = max(t, quantum)
    while t > quantum and total % t != 0:
        t -= quantum
    return t if total % t == 0 else total


# -----------------------------------------------------------------------------
# Pallas kernels
# -----------------------------------------------------------------------------
def mlp_fused_pallas(x, w6_p, b6_p, w7_p, b7_p, *, tk6, tm_cap=256):
    """relu(relu(x @ w6 + b6) @ w7 + b7) in one pallas_call, bf16 output.

    x:    (M, K) activations (any float dtype; cast to bf16 here).
    w6_p: (Kp, Rp) bf16, pre-padded to tile multiples (Kp % tk6 == 0, Rp % 128 == 0).
    b6_p: (1, Rp) f32.    w7_p: (Rp, Rp) bf16.    b7_p: (1, Rp) f32.

    Grid = (M tiles, fc6-K tiles).  fc6 accumulates in an f32 VMEM scratch;
    fc7 weights have a constant block index so they stay resident in VMEM and
    are applied only in the pl.when finalize on the last K step.
    """
    m, k = x.shape
    kp, rep_p = w6_p.shape
    tm = min(tm_cap, _round_up(m, 16))          # bf16: 16 sublanes per vreg
    mp = _round_up(m, tm)
    xp = jnp.pad(x.astype(jnp.bfloat16), ((0, mp - m), (0, kp - k)))
    nk = kp // tk6

    def kernel(x_ref, w6_ref, b6_ref, w7_ref, b7_ref, o_ref, acc_ref):
        @pl.when(pl.program_id(1) == 0)
        def _init():
            acc_ref[...] = jnp.zeros_like(acc_ref)

        acc_ref[...] += jnp.dot(x_ref[...], w6_ref[...],
                                preferred_element_type=jnp.float32)

        @pl.when(pl.program_id(1) == nk - 1)
        def _finalize():
            h6 = jnp.maximum(acc_ref[...] + b6_ref[...], 0.0)
            h7 = jnp.dot(h6.astype(jnp.bfloat16), w7_ref[...],
                         preferred_element_type=jnp.float32) + b7_ref[...]
            o_ref[...] = jnp.maximum(h7, 0.0).astype(o_ref.dtype)

    out = pl.pallas_call(
        kernel,
        out_shape=jax.ShapeDtypeStruct((mp, rep_p), jnp.bfloat16),
        grid_spec=pltpu.PrefetchScalarGridSpec(
            num_scalar_prefetch=0,
            grid=(mp // tm, nk),
            in_specs=[
                pl.BlockSpec((tm, tk6), lambda i, kk: (i, kk)),
                pl.BlockSpec((tk6, rep_p), lambda i, kk: (kk, 0)),
                pl.BlockSpec((1, rep_p), lambda i, kk: (0, 0)),
                pl.BlockSpec((rep_p, rep_p), lambda i, kk: (0, 0)),  # resident
                pl.BlockSpec((1, rep_p), lambda i, kk: (0, 0)),
            ],
            out_specs=pl.BlockSpec((tm, rep_p), lambda i, kk: (i, 0)),
            scratch_shapes=[pltpu.VMEM((tm, rep_p), jnp.float32)],
        ),
        compiler_params=pltpu.CompilerParams(
            dimension_semantics=("parallel", "arbitrary"),
            vmem_limit_bytes=32 * 1024 * 1024,   # safe on v7x (64 MiB/TC)
        ),
    )(xp, w6_p, b6_p, w7_p, b7_p)
    return out[:m]


def linear_prepadded_pallas(x, w_p, b_p, *, relu=False, out_dtype=jnp.float32,
                            tm=256, tn=128, tk=512):
    """y = x @ w + b (optional ReLU) with PRE-PADDED bf16 weight / f32 bias.

    x: (M, K); w_p: (Kp, Np) bf16; b_p: (1, Np) f32.  f32 VMEM accumulator,
    bias/ReLU/cast only on the last K tile.  tn defaults to 128 so the head
    matmul keeps >1 parallel grid blocks (v7x dual-TC sharding).
    """
    m, k = x.shape
    kp, np_ = w_p.shape
    tm = min(tm, _round_up(m, 16))
    tn = _pick_tile(np_, tn, 128)
    tk = _pick_tile(kp, tk, 128)
    mp = _round_up(m, tm)
    xp = jnp.pad(x.astype(jnp.bfloat16), ((0, mp - m), (0, kp - k)))
    nk = kp // tk

    def kernel(x_ref, w_ref, b_ref, o_ref, acc_ref):
        @pl.when(pl.program_id(2) == 0)
        def _init():
            acc_ref[...] = jnp.zeros_like(acc_ref)

        acc_ref[...] += jnp.dot(x_ref[...], w_ref[...],
                                preferred_element_type=jnp.float32)

        @pl.when(pl.program_id(2) == nk - 1)
        def _finalize():
            y = acc_ref[...] + b_ref[...]
            if relu:
                y = jnp.maximum(y, 0.0)
            o_ref[...] = y.astype(o_ref.dtype)

    out = pl.pallas_call(
        kernel,
        out_shape=jax.ShapeDtypeStruct((mp, np_), out_dtype),
        grid_spec=pltpu.PrefetchScalarGridSpec(
            num_scalar_prefetch=0,
            grid=(mp // tm, np_ // tn, nk),
            in_specs=[
                pl.BlockSpec((tm, tk), lambda i, j, kk: (i, kk)),
                pl.BlockSpec((tk, tn), lambda i, j, kk: (kk, j)),
                pl.BlockSpec((1, tn), lambda i, j, kk: (0, j)),
            ],
            out_specs=pl.BlockSpec((tm, tn), lambda i, j, kk: (i, j)),
            scratch_shapes=[pltpu.VMEM((tm, tn), jnp.float32)],
        ),
        compiler_params=pltpu.CompilerParams(
            dimension_semantics=("parallel", "parallel", "arbitrary"),
            vmem_limit_bytes=32 * 1024 * 1024,
        ),
    )(xp, w_p, b_p)
    return out[:m]


def attention_apply_pallas(shifted_logits, feat2):
    """Broadcast-multiply pass of attention_norm, restricted to the topk classes.

    shifted_logits: (topk, HW) = heat[top_c] * scale - logsumexp(full heatmap * scale)
    feat2:          (Cin, HW) f32
    returns         (topk, Cin, HW) bf16 = exp(shifted)[:, None, :] * feat2[None]

    Grid = (HW-tiles, topk) with the CLASS axis innermost so the dominant
    feat2 tile keeps the same block index and is not re-fetched per class.
    exp runs on the EUP; the f32 product is cast to bf16 on the store.
    """
    topk, hw = shifted_logits.shape
    cin = feat2.shape[0]
    thw = _pick_tile(hw, 512, 128)
    heat3 = shifted_logits.reshape(topk, 1, hw)

    def kernel(h_ref, f_ref, o_ref):
        att = jnp.exp(h_ref[...])                                 # (1,1,thw) EUP
        o_ref[...] = (att * f_ref[...][None, :, :]).astype(o_ref.dtype)

    return pl.pallas_call(
        kernel,
        out_shape=jax.ShapeDtypeStruct((topk, cin, hw), jnp.bfloat16),
        grid=(hw // thw, topk),                 # class innermost
        in_specs=[
            pl.BlockSpec((1, 1, thw), lambda j, c: (c, 0, j)),
            pl.BlockSpec((cin, thw), lambda j, c: (0, j)),        # stays resident over c
        ],
        out_specs=pl.BlockSpec((1, cin, thw), lambda j, c: (c, 0, j)),
        compiler_params=pltpu.CompilerParams(
            dimension_semantics=("parallel", "parallel")),
    )(heat3, feat2)


# -----------------------------------------------------------------------------
# Plain-JAX glue
# -----------------------------------------------------------------------------
def roi_pool(feat, boxes, r):
    """Bilinear ROI pooling (simplified ROIAlign) in plain JAX.

    feat: (C, H, W) (bf16 ok; interpolation math promotes to f32),
    boxes: (N, 4) as (x1, y1, x2, y2) in feature-map coords -> (N, C, r, r) f32.
    """
    # TODO(synk): exact ROIAlign (sampling_ratio sub-bins) is gather-heavy and
    # kept as JAX glue; this is a single-sample bilinear crop.
    c, h, w = feat.shape
    x1, y1, x2, y2 = boxes[:, 0], boxes[:, 1], boxes[:, 2], boxes[:, 3]
    grid = (jnp.arange(r, dtype=jnp.float32) + 0.5) / r
    ys = y1[:, None] + grid[None, :] * (y2 - y1)[:, None]
    xs = x1[:, None] + grid[None, :] * (x2 - x1)[:, None]
    y0 = jnp.clip(jnp.floor(ys), 0, h - 2).astype(jnp.int32)
    x0 = jnp.clip(jnp.floor(xs), 0, w - 2).astype(jnp.int32)
    wy = jnp.clip(ys - y0.astype(jnp.float32), 0.0, 1.0)
    wx = jnp.clip(xs - x0.astype(jnp.float32), 0.0, 1.0)
    yy0 = y0[:, :, None]
    yy1 = yy0 + 1
    xx0 = x0[:, None, :]
    xx1 = xx0 + 1
    f00 = feat[:, yy0, xx0]
    f01 = feat[:, yy0, xx1]
    f10 = feat[:, yy1, xx0]
    f11 = feat[:, yy1, xx1]
    wy_ = wy[None, :, :, None]
    wx_ = wx[None, :, None, :]
    pooled = (f00 * (1 - wy_) * (1 - wx_) + f01 * (1 - wy_) * wx_ +
              f10 * wy_ * (1 - wx_) + f11 * wy_ * wx_)            # (C, N, r, r) f32
    return jnp.transpose(pooled, (1, 0, 2, 3))


def projection(boxes, scores, hw, th, num_classes):
    """Paint per-class heatmaps from scored boxes -> (num_classes, 1, H, W).

    Running per-class max over a lax.scan over boxes: never materializes the
    (num_classes, Nroi, H, W) intermediate.
    """
    # TODO(synk): the original `projection` op (applied to NMS'd BoxLists) is
    # not available; this paints the per-class score inside each raw box.
    h, w = hw
    ys = jnp.arange(h, dtype=jnp.float32)
    xs = jnp.arange(w, dtype=jnp.float32)
    sc = jnp.where(scores > th, scores, 0.0)                      # (N, C)

    def step(heat, inp):
        box, s = inp
        inside = ((ys[:, None] >= box[1]) & (ys[:, None] <= box[3]) &
                  (xs[None, :] >= box[0]) & (xs[None, :] <= box[2])
                  ).astype(jnp.float32)                           # (H, W)
        return jnp.maximum(heat, s[:, None, None] * inside[None]), None

    heat0 = jnp.zeros((num_classes, h, w), jnp.float32)
    heat, _ = lax.scan(step, heat0, (boxes, sc))
    return heat[:, None, :, :]


def convlstm_step(x, h_prev, c_prev, w, b):
    """Single-layer ConvLSTM step (gate order i, f, o, g).  x: (B, in, H, W)."""
    inp = jnp.concatenate([x, h_prev], axis=1)
    gates = lax.conv_general_dilated(
        inp, w, window_strides=(1, 1), padding='SAME',
        dimension_numbers=('NCHW', 'OIHW', 'NCHW'))
    gates = gates + b.reshape(1, -1, 1, 1)
    gi, gf, go, gg = jnp.split(gates, 4, axis=1)
    # Gate nonlinearities + state update left to XLA fusion per perf review:
    # with hid=1 and tiny per-frame tensors a Pallas call's dispatch cost
    # exceeds its compute.
    i = jax.nn.sigmoid(gi)
    f = jax.nn.sigmoid(gf)
    o = jax.nn.sigmoid(go)
    g = jnp.tanh(gg)
    c_next = f * c_prev + i * g
    h_next = o * jnp.tanh(c_next)
    return h_next, c_next


# -----------------------------------------------------------------------------
# Per-frame numeric step (jitted once, reused every frame)
# -----------------------------------------------------------------------------
def _frame_step(weights, feat_i, h_prev, c_prev, boxes, *,
                num_classes, topk, pool_r, project_th, rep, tk6):
    cin, fh, fw = feat_i.shape
    hw = fh * fw
    heatmap = h_prev                                   # (Ncls, hid=1, H, W)
    heat2 = heatmap.reshape(num_classes, -1)           # (Ncls, hid*HW)

    # attention_norm restricted to the topk classes before the broadcast
    # multiply; the global-softmax normalizer (over ALL classes and pixels,
    # matching the reference) is folded into the exponent.
    heatsum = heat2.sum(axis=1)
    _, top_c = jax.lax.top_k(heatsum, topk)
    scale = 1.0 / math.sqrt(float(heat2.size))
    z = heat2 * scale
    m = jnp.max(z)
    lse = m + jnp.log(jnp.sum(jnp.exp(z - m)))
    shifted = z[top_c] - lse                                       # (topk, HW)
    comb_sel = attention_apply_pallas(shifted, feat_i.reshape(cin, hw))
    comb_sel = comb_sel.reshape(topk, cin, fh, fw)                 # bf16

    nroi = boxes.shape[0]
    # topk folded into the matmul M-dimension: weights stream once per frame.
    pooled = jax.vmap(lambda f: roi_pool(f, boxes, pool_r))(comb_sel)
    flat = pooled.reshape(topk * nroi, cin * pool_r * pool_r)

    # fc6 -> fc7 fused in one pallas_call (bf16 out, f32 accumulation).
    h7 = mlp_fused_pallas(flat, weights['fc6_w_p'], weights['fc6_b_p'],
                          weights['fc7_w_p'], weights['fc7_b_p'], tk6=tk6)

    # topk-mean BEFORE the head matmul.  Valid ONLY because the predictor is
    # affine (no activation): mean_k(h_k) @ W + b == mean_k(h_k @ W + b).
    x_i = h7[:, :rep].astype(jnp.float32).reshape(topk, nroi, rep).mean(axis=0)

    y = linear_prepadded_pallas(x_i, weights['head_w_p'], weights['head_b_p'],
                                relu=False, out_dtype=jnp.float32, tn=128)
    cls_i = y[:, :num_classes]
    box_i = y[:, num_classes:num_classes * 5]

    # TODO(synk): post_processor (box decode + per-class NMS on BoxList) has no
    # clean Pallas equivalent; returning raw proposals + softmax scores.
    scores_i = jax.nn.softmax(cls_i, axis=-1)

    proj = projection(boxes, scores_i, (fh, fw), project_th, num_classes)
    h_next, c_next = convlstm_step(proj, h_prev, c_prev,
                                   weights['lstm_w'], weights['lstm_b'])
    return x_i, scores_i, box_i, h_next, c_next


# -----------------------------------------------------------------------------
# ROIBoxHeadVideo (Pallas version)
# -----------------------------------------------------------------------------
class ROIBoxHeadVideoPallas:
    def __init__(self, params, *, num_classes, topk, pool_r, project_th,
                 lstm_hidden, lstm_kernel):
        self.num_classes = num_classes
        self.topk = topk
        self.pool_r = pool_r
        self.project_th = project_th
        self.lstm_hidden = lstm_hidden
        self.lstm_kernel = lstm_kernel
        self.combination = 'attention_norm'   # cfg.MODEL.ROI_BOX_HEAD.RNN.COMBINATION

        fc_in, rep = params['fc6_w'].shape
        self.rep = rep
        rep_p = _round_up(rep, 128)
        kp6 = _round_up(fc_in, 128)
        self.tk6 = _pick_tile(kp6, 512, 128)
        nh = num_classes * 5
        nhp = _round_up(nh, 128)

        def pad2(a, rows, cols, dt):
            return jnp.pad(a, ((0, rows - a.shape[0]),
                               (0, cols - a.shape[1]))).astype(dt)

        def pad1(a, n):
            return jnp.pad(a, (0, n - a.shape[0])).astype(jnp.float32).reshape(1, n)

        # All matmul weights padded to tile multiples + cast to bf16 ONCE here
        # (f32 accumulation in the kernels); cls/bbox heads fused into one
        # lane-padded matmul.
        head_w = jnp.concatenate([params['cls_w'], params['bbox_w']], axis=1)
        head_b = jnp.concatenate([params['cls_b'], params['bbox_b']])
        self.weights = {
            'fc6_w_p': pad2(params['fc6_w'], kp6, rep_p, jnp.bfloat16),
            'fc6_b_p': pad1(params['fc6_b'], rep_p),
            'fc7_w_p': pad2(params['fc7_w'], rep_p, rep_p, jnp.bfloat16),
            'fc7_b_p': pad1(params['fc7_b'], rep_p),
            'head_w_p': pad2(head_w, rep_p, nhp, jnp.bfloat16),
            'head_b_p': pad1(head_b, nhp),
            'lstm_w': params['lstm_w'].astype(jnp.float32),
            'lstm_b': params['lstm_b'].astype(jnp.float32),
        }

        self._step = jax.jit(functools.partial(
            _frame_step, num_classes=num_classes, topk=topk, pool_r=pool_r,
            project_th=float(project_th), rep=rep, tk6=self.tk6))

        self.last_state = None
        self.video = ''

    def forward(self, features, proposals, targets=None, videos=None, frames=None):
        fh, fw = features[0].shape[2], features[0].shape[3]
        x_all, results, losses = [], [], {}

        # The per-image loop stays sequential: frame i's heatmap is the ConvLSTM
        # hidden state produced by frame i-1 of the same video.
        # TODO(synk): frames of DIFFERENT videos in one batch are independent and
        # could be concatenated along M into one matmul call; not done here.
        for idx in range(features[0].shape[0]):
            if self.video == videos[idx] and self.last_state is not None:
                h_prev, c_prev = self.last_state[-1]
            else:
                h_prev = jnp.zeros((self.num_classes, self.lstm_hidden, fh, fw),
                                   jnp.float32)
                c_prev = jnp.zeros_like(h_prev)

            # TODO(synk): loss_evaluator.subsample (training-time proposal
            # sampling against targets) has no Pallas equivalent; skipped.
            x_i, scores_i, box_reg_i, h_next, c_next = self._step(
                self.weights, features[0][idx], h_prev, c_prev, proposals[idx])

            results.append({'boxes': proposals[idx], 'scores': scores_i,
                            'box_regression': box_reg_i})

            # TODO(synk): loss_evaluator (matching + CE / SmoothL1) skipped;
            # returning zero losses with the original dict structure.
            losses_i = {'loss_classifier': jnp.float32(0.0),
                        'loss_box_reg': jnp.float32(0.0)}
            for k, v in losses_i.items():
                losses[k] = losses[k] + v if k in losses else v

            self.last_state = [(h_next, c_next)]
            self.video = videos[idx]
            x_all.append(x_i)

        x = jnp.concatenate(x_all, axis=0)
        return x, results, losses


# -----------------------------------------------------------------------------
# Deterministic parameter init + demo
# -----------------------------------------------------------------------------
def init_params(key, *, in_channels, pool_r, rep_size, num_classes,
                lstm_in, lstm_hidden, lstm_kernel):
    ks = jax.random.split(key, 6)
    fc_in = in_channels * pool_r * pool_r

    def w(k, shape):
        return (0.02 * jax.random.normal(k, shape)).astype(jnp.float32)

    return {
        'fc6_w': w(ks[0], (fc_in, rep_size)),
        'fc6_b': jnp.zeros((rep_size,), jnp.float32),
        'fc7_w': w(ks[1], (rep_size, rep_size)),
        'fc7_b': jnp.zeros((rep_size,), jnp.float32),
        'cls_w': w(ks[2], (rep_size, num_classes)),
        'cls_b': jnp.zeros((num_classes,), jnp.float32),
        'bbox_w': w(ks[3], (rep_size, num_classes * 4)),
        'bbox_b': jnp.zeros((num_classes * 4,), jnp.float32),
        # ConvLSTM conv weight in OIHW, gate order (i, f, o, g)
        'lstm_w': w(ks[4], (4 * lstm_hidden, lstm_in + lstm_hidden,
                            lstm_kernel, lstm_kernel)),
        'lstm_b': jnp.zeros((4 * lstm_hidden,), jnp.float32),
    }


if __name__ == "__main__":
    # Small synthetic config (cfg.MODEL.ROI_BOX_HEAD.*)
    B, CIN, H, W = 2, 16, 16, 16          # features[0]: (B, Cin, H, W)
    NUM_CLASSES = 8                        # ROI_BOX_HEAD.NUM_CLASSES
    TOPK = 2                               # RNN.TOPK
    POOL_R = 4                             # pooler resolution
    REP = 64                               # MLP representation size
    N_ROI = 8                              # proposals per image
    PROJECT_TH = 0.05                      # RNN.PROJECT_TH
    LSTM_IN, LSTM_HID, LSTM_K = 1, 1, 3    # RNN.INPUT_DIM / HIDDEN_DIM / KERNEL_SIZE

    key = jax.random.PRNGKey(0)
    k_feat, k_p1, k_p2, k_param = jax.random.split(key, 4)

    features = [jax.random.normal(k_feat, (B, CIN, H, W), jnp.float32)]
    # proposals: (B, N_ROI, 4) boxes in feature-map coordinates (x1, y1, x2, y2)
    p1 = jax.random.uniform(k_p1, (B, N_ROI, 2), minval=0.0, maxval=7.0)
    p2 = p1 + jax.random.uniform(k_p2, (B, N_ROI, 2), minval=3.0, maxval=7.0)
    proposals = jnp.concatenate(
        [p1, jnp.minimum(p2, jnp.float32(W - 1))], axis=-1).astype(jnp.float32)
    videos = ["vid_a", "vid_a"]            # same video -> second frame reuses RNN state
    frames = [0, 1]

    params = init_params(k_param, in_channels=CIN, pool_r=POOL_R, rep_size=REP,
                         num_classes=NUM_CLASSES, lstm_in=LSTM_IN,
                         lstm_hidden=LSTM_HID, lstm_kernel=LSTM_K)

    head = ROIBoxHeadVideoPallas(params, num_classes=NUM_CLASSES, topk=TOPK,
                                 pool_r=POOL_R, project_th=PROJECT_TH,
                                 lstm_hidden=LSTM_HID, lstm_kernel=LSTM_K)

    x, results, losses = head.forward(features, proposals, targets=None,
                                      videos=videos, frames=frames)
    jax.block_until_ready(x)
    jax.block_until_ready(head.last_state[-1][0])
    assert x.shape == (B * N_ROI, REP)
    assert results[0]['scores'].shape == (N_ROI, NUM_CLASSES)
    assert results[0]['box_regression'].shape == (N_ROI, 4 * NUM_CLASSES)
    print("KERNEL_OK")
</pallas_src>

<mosaic_0001>
module attributes {stable_mosaic.version = 11 : i64} {
  func.func @kernel(%arg0: i32, %arg1: i32, %arg2: memref<1x1x256xf32, #tpu.memory_space<vmem>>, %arg3: memref<16x256xf32, #tpu.memory_space<vmem>>, %arg4: memref<1x16x256xbf16, #tpu.memory_space<vmem>>) attributes {dimension_semantics = [#tpu.dimension_semantics<parallel>, #tpu.dimension_semantics<parallel>], iteration_bounds = array<i64: 1, 2>, scalar_prefetch = 0 : i64, scratch_operands = 0 : i64, tpu.core_type = #tpu.core_type<tc>, window_params = [{transform_indices = @transform_0, window_bounds = array<i64: 1, 1, 256>}, {transform_indices = @transform_1, window_bounds = array<i64: 16, 256>}, {transform_indices = @transform_2, window_bounds = array<i64: 1, 16, 256>}]} {
    %c0 = arith.constant 0 : index
    %c0_0 = arith.constant 0 : index
    %c0_1 = arith.constant 0 : index
    %0 = vector.load %arg2[%c0, %c0_0, %c0_1] : memref<1x1x256xf32, #tpu.memory_space<vmem>>, vector<1x1x256xf32>
    %1 = math.exp %0 : vector<1x1x256xf32>
    %c0_2 = arith.constant 0 : index
    %c0_3 = arith.constant 0 : index
    %2 = vector.load %arg3[%c0_2, %c0_3] : memref<16x256xf32, #tpu.memory_space<vmem>>, vector<16x256xf32>
    %3 = vector.shape_cast %2 : vector<16x256xf32> to vector<1x16x256xf32>
    %4 = vector.broadcast %1 : vector<1x1x256xf32> to vector<1x16x256xf32>
    %5 = arith.mulf %4, %3 : vector<1x16x256xf32>
    %6 = arith.truncf %5 : vector<1x16x256xf32> to vector<1x16x256xbf16>
    %c0_4 = arith.constant 0 : index
    %c0_5 = arith.constant 0 : index
    %c0_6 = arith.constant 0 : index
    %7 = vector.load %arg4[%c0_4, %c0_5, %c0_6] : memref<1x16x256xbf16, #tpu.memory_space<vmem>>, vector<1x16x256xbf16>
    tpu.vector_store %arg4[%c0_4, %c0_5, %c0_6], %6 {strides = array<i32>} : memref<1x16x256xbf16, #tpu.memory_space<vmem>>, vector<1x16x256xbf16>,
    return
  }
  func.func @transform_0(%arg0: i32, %arg1: i32) -> (i32, i32, i32) {
    %c0_i32 = arith.constant 0 : i32
    %c0_i32_0 = arith.constant 0 : i32
    return %arg1, %c0_i32, %arg0 : i32, i32, i32
  }
  func.func @transform_1(%arg0: i32, %arg1: i32) -> (i32, i32) {
    %c0_i32 = arith.constant 0 : i32
    %c0_i32_0 = arith.constant 0 : i32
    return %c0_i32, %arg0 : i32, i32
  }
  func.func @transform_2(%arg0: i32, %arg1: i32) -> (i32, i32, i32) {
    %c0_i32 = arith.constant 0 : i32
    %c0_i32_0 = arith.constant 0 : i32
    return %arg1, %c0_i32, %arg0 : i32, i32, i32
  }
}

module attributes {stable_mosaic.version = 11 : i64} {
  func.func @kernel(%arg0: i32, %arg1: i32, %arg2: memref<16x256xbf16, #tpu.memory_space<vmem>>, %arg3: memref<256x128xbf16, #tpu.memory_space<vmem>>, %arg4: memref<1x128xf32, #tpu.memory_space<vmem>>, %arg5: memref<128x128xbf16, #tpu.memory_space<vmem>>, %arg6: memref<1x128xf32, #tpu.memory_space<vmem>>, %arg7: memref<16x128xbf16, #tpu.memory_space<vmem>>, %arg8: memref<16x128xf32, #tpu.memory_space<vmem>>) attributes {dimension_semantics = [#tpu.dimension_semantics<parallel>, #tpu.dimension_semantics<arbitrary>], iteration_bounds = array<i64: 1, 1>, scalar_prefetch = 0 : i64, scratch_operands = 1 : i64, tpu.core_type = #tpu.core_type<tc>, window_params = [{transform_indices = @transform_0, window_bounds = array<i64: 16, 256>}, {transform_indices = @transform_1, window_bounds = array<i64: 256, 128>}, {pipeline_mode = #tpu.pipeline_mode<synchronous>, transform_indices = @transform_2, window_bounds = array<i64: 1, 128>}, {pipeline_mode = #tpu.pipeline_mode<synchronous>, transform_indices = @transform_3, window_bounds = array<i64: 128, 128>}, {pipeline_mode = #tpu.pipeline_mode<synchronous>, transform_indices = @transform_4, window_bounds = array<i64: 1, 128>}, {transform_indices = @transform_5, window_bounds = array<i64: 16, 128>}]} {
    %c0_i32 = arith.constant 0 : i32
    %0 = arith.cmpi eq, %arg1, %c0_i32 : i32
    %1 = arith.extui %0 : i1 to i32
    %c0_i32_0 = arith.constant 0 : i32
    %2 = arith.cmpi ne, %1, %c0_i32_0 : i32
    scf.if %2 {
      %cst_10 = arith.constant 0.000000e+00 : f32
      %12 = vector.broadcast %cst_10 : f32 to vector<16x128xf32>
      %c0_11 = arith.constant 0 : index
      %c0_12 = arith.constant 0 : index
      %13 = vector.load %arg8[%c0_11, %c0_12] : memref<16x128xf32, #tpu.memory_space<vmem>>, vector<16x128xf32>
      tpu.vector_store %arg8[%c0_11, %c0_12], %12 {strides = array<i32>} : memref<16x128xf32, #tpu.memory_space<vmem>>, vector<16x128xf32>,
    } else {
    }
    %c0 = arith.constant 0 : index
    %c0_1 = arith.constant 0 : index
    %3 = vector.load %arg8[%c0, %c0_1] : memref<16x128xf32, #tpu.memory_space<vmem>>, vector<16x128xf32>
    %c0_2 = arith.constant 0 : index
    %c0_3 = arith.constant 0 : index
    %4 = vector.load %arg2[%c0_2, %c0_3] : memref<16x256xbf16, #tpu.memory_space<vmem>>, vector<16x256xbf16>
    %c0_4 = arith.constant 0 : index
    %c0_5 = arith.constant 0 : index
    %5 = vector.load %arg3[%c0_4, %c0_5] : memref<256x128xbf16, #tpu.memory_space<vmem>>, vector<256x128xbf16>
    %cst = arith.constant dense<0.000000e+00> : vector<16x128xf32>
    %6 = tpu.matmul %4, %5, %cst {dimension_numbers = #tpu.dot_dimension_numbers<[1], [0], [0], [1], [0, 0, 1, 1], [], []>} : vector<16x256xbf16>, vector<256x128xbf16>, vector<16x128xf32> -> vector<16x128xf32>
    %7 = arith.addf %3, %6 : vector<16x128xf32>
    %c0_6 = arith.constant 0 : index
    %c0_7 = arith.constant 0 : index
    %8 = vector.load %arg8[%c0_6, %c0_7] : memref<16x128xf32, #tpu.memory_space<vmem>>, vector<16x128xf32>
    tpu.vector_store %arg8[%c0_6, %c0_7], %7 {strides = array<i32>} : memref<16x128xf32, #tpu.memory_space<vmem>>, vector<16x128xf32>,
    %c0_i32_8 = arith.constant 0 : i32
    %9 = arith.cmpi eq, %arg1, %c0_i32_8 : i32
    %10 = arith.extui %9 : i1 to i32
    %c0_i32_9 = arith.constant 0 : i32
    %11 = arith.cmpi ne, %10, %c0_i32_9 : i32
    scf.if %11 {
      %c0_10 = arith.constant 0 : index
      %c0_11 = arith.constant 0 : index
      %12 = vector.load %arg8[%c0_10, %c0_11] : memref<16x128xf32, #tpu.memory_space<vmem>>, vector<16x128xf32>
      %c0_12 = arith.constant 0 : index
      %c0_13 = arith.constant 0 : index
      %13 = vector.load %arg4[%c0_12, %c0_13] : memref<1x128xf32, #tpu.memory_space<vmem>>, vector<1x128xf32>
      %14 = vector.broadcast %13 : vector<1x128xf32> to vector<16x128xf32>
      %15 = arith.addf %12, %14 : vector<16x128xf32>
      %cst_14 = arith.constant 0.000000e+00 : f32
      %16 = vector.broadcast %cst_14 : f32 to vector<16x128xf32>
      %17 = arith.maximumf %15, %16 : vector<16x128xf32>
      %18 = arith.truncf %17 : vector<16x128xf32> to vector<16x128xbf16>
      %c0_15 = arith.constant 0 : index
      %c0_16 = arith.constant 0 : index
      %19 = vector.load %arg5[%c0_15, %c0_16] : memref<128x128xbf16, #tpu.memory_space<vmem>>, vector<128x128xbf16>
      %cst_17 = arith.constant dense<0.000000e+00> : vector<16x128xf32>
      %20 = tpu.matmul %18, %19, %cst_17 {dimension_numbers = #tpu.dot_dimension_numbers<[1], [0], [0], [1], [0, 0, 1, 1], [], []>} : vector<16x128xbf16>, vector<128x128xbf16>, vector<16x128xf32> -> vector<16x128xf32>
      %c0_18 = arith.constant 0 : index
      %c0_19 = arith.constant 0 : index
      %21 = vector.load %arg6[%c0_18, %c0_19] : memref<1x128xf32, #tpu.memory_space<vmem>>, vector<1x128xf32>
      %22 = vector.broadcast %21 : vector<1x128xf32> to vector<16x128xf32>
      %23 = arith.addf %20, %22 : vector<16x128xf32>
      %cst_20 = arith.constant 0.000000e+00 : f32
      %24 = vector.broadcast %cst_20 : f32 to vector<16x128xf32>
      %25 = arith.maximumf %23, %24 : vector<16x128xf32>
      %26 = arith.truncf %25 : vector<16x128xf32> to vector<16x128xbf16>
      %c0_21 = arith.constant 0 : index
      %c0_22 = arith.constant 0 : index
      %27 = vector.load %arg7[%c0_21, %c0_22] : memref<16x128xbf16, #tpu.memory_space<vmem>>, vector<16x128xbf16>
      tpu.vector_store %arg7[%c0_21, %c0_22], %26 {strides = array<i32>} : memref<16x128xbf16, #tpu.memory_space<vmem>>, vector<16x128xbf16>,
    } else {
    }
    return
  }
  func.func @transform_0(%arg0: i32, %arg1: i32) -> (i32, i32) {
    %c0_i32 = arith.constant 0 : i32
    return %arg0, %arg1 : i32, i32
  }
  func.func @transform_1(%arg0: i32, %arg1: i32) -> (i32, i32) {
    %c0_i32 = arith.constant 0 : i32
    %c0_i32_0 = arith.constant 0 : i32
    return %arg1, %c0_i32 : i32, i32
  }
  func.func @transform_2(%arg0: i32, %arg1: i32) -> (i32, i32) {
    %c0_i32 = arith.constant 0 : i32
    %c0_i32_0 = arith.constant 0 : i32
    %c0_i32_1 = arith.constant 0 : i32
    return %c0_i32, %c0_i32_0 : i32, i32
  }
  func.func @transform_3(%arg0: i32, %arg1: i32) -> (i32, i32) {
    %c0_i32 = arith.constant 0 : i32
    %c0_i32_0 = arith.constant 0 : i32
    %c0_i32_1 = arith.constant 0 : i32
    return %c0_i32, %c0_i32_0 : i32, i32
  }
  func.func @transform_4(%arg0: i32, %arg1: i32) -> (i32, i32) {
    %c0_i32 = arith.constant 0 : i32
    %c0_i32_0 = arith.constant 0 : i32
    %c0_i32_1 = arith.constant 0 : i32
    return %c0_i32, %c0_i32_0 : i32, i32
  }
  func.func @transform_5(%arg0: i32, %arg1: i32) -> (i32, i32) {
    %c0_i32 = arith.constant 0 : i32
    %c0_i32_0 = arith.constant 0 : i32
    return %arg0, %c0_i32 : i32, i32
  }
}

module attributes {stable_mosaic.version = 11 : i64} {
  func.func @kernel(%arg0: i32, %arg1: i32, %arg2: i32, %arg3: memref<16x128xbf16, #tpu.memory_space<vmem>>, %arg4: memref<128x128xbf16, #tpu.memory_space<vmem>>, %arg5: memref<1x128xf32, #tpu.memory_space<vmem>>, %arg6: memref<16x128xf32, #tpu.memory_space<vmem>>, %arg7: memref<16x128xf32, #tpu.memory_space<vmem>>) attributes {dimension_semantics = [#tpu.dimension_semantics<parallel>, #tpu.dimension_semantics<parallel>, #tpu.dimension_semantics<arbitrary>], iteration_bounds = array<i64: 1, 1, 1>, scalar_prefetch = 0 : i64, scratch_operands = 1 : i64, tpu.core_type = #tpu.core_type<tc>, window_params = [{transform_indices = @transform_0, window_bounds = array<i64: 16, 128>}, {transform_indices = @transform_1, window_bounds = array<i64: 128, 128>}, {transform_indices = @transform_2, window_bounds = array<i64: 1, 128>}, {transform_indices = @transform_3, window_bounds = array<i64: 16, 128>}]} {
    %c0_i32 = arith.constant 0 : i32
    %0 = arith.cmpi eq, %arg2, %c0_i32 : i32
    %1 = arith.extui %0 : i1 to i32
    %c0_i32_0 = arith.constant 0 : i32
    %2 = arith.cmpi ne, %1, %c0_i32_0 : i32
    scf.if %2 {
      %cst_10 = arith.constant 0.000000e+00 : f32
      %12 = vector.broadcast %cst_10 : f32 to vector<16x128xf32>
      %c0_11 = arith.constant 0 : index
      %c0_12 = arith.constant 0 : index
      %13 = vector.load %arg7[%c0_11, %c0_12] : memref<16x128xf32, #tpu.memory_space<vmem>>, vector<16x128xf32>
      tpu.vector_store %arg7[%c0_11, %c0_12], %12 {strides = array<i32>} : memref<16x128xf32, #tpu.memory_space<vmem>>, vector<16x128xf32>,
    } else {
    }
    %c0 = arith.constant 0 : index
    %c0_1 = arith.constant 0 : index
    %3 = vector.load %arg7[%c0, %c0_1] : memref<16x128xf32, #tpu.memory_space<vmem>>, vector<16x128xf32>
    %c0_2 = arith.constant 0 : index
    %c0_3 = arith.constant 0 : index
    %4 = vector.load %arg3[%c0_2, %c0_3] : memref<16x128xbf16, #tpu.memory_space<vmem>>, vector<16x128xbf16>
    %c0_4 = arith.constant 0 : index
    %c0_5 = arith.constant 0 : index
    %5 = vector.load %arg4[%c0_4, %c0_5] : memref<128x128xbf16, #tpu.memory_space<vmem>>, vector<128x128xbf16>
    %cst = arith.constant dense<0.000000e+00> : vector<16x128xf32>
    %6 = tpu.matmul %4, %5, %cst {dimension_numbers = #tpu.dot_dimension_numbers<[1], [0], [0], [1], [0, 0, 1, 1], [], []>} : vector<16x128xbf16>, vector<128x128xbf16>, vector<16x128xf32> -> vector<16x128xf32>
    %7 = arith.addf %3, %6 : vector<16x128xf32>
    %c0_6 = arith.constant 0 : index
    %c0_7 = arith.constant 0 : index
    %8 = vector.load %arg7[%c0_6, %c0_7] : memref<16x128xf32, #tpu.memory_space<vmem>>, vector<16x128xf32>
    tpu.vector_store %arg7[%c0_6, %c0_7], %7 {strides = array<i32>} : memref<16x128xf32, #tpu.memory_space<vmem>>, vector<16x128xf32>,
    %c0_i32_8 = arith.constant 0 : i32
    %9 = arith.cmpi eq, %arg2, %c0_i32_8 : i32
    %10 = arith.extui %9 : i1 to i32
    %c0_i32_9 = arith.constant 0 : i32
    %11 = arith.cmpi ne, %10, %c0_i32_9 : i32
    scf.if %11 {
      %c0_10 = arith.constant 0 : index
      %c0_11 = arith.constant 0 : index
      %12 = vector.load %arg7[%c0_10, %c0_11] : memref<16x128xf32, #tpu.memory_space<vmem>>, vector<16x128xf32>
      %c0_12 = arith.constant 0 : index
      %c0_13 = arith.constant 0 : index
      %13 = vector.load %arg5[%c0_12, %c0_13] : memref<1x128xf32, #tpu.memory_space<vmem>>, vector<1x128xf32>
      %14 = vector.broadcast %13 : vector<1x128xf32> to vector<16x128xf32>
      %15 = arith.addf %12, %14 : vector<16x128xf32>
      %c0_14 = arith.constant 0 : index
      %c0_15 = arith.constant 0 : index
      %16 = vector.load %arg6[%c0_14, %c0_15] : memref<16x128xf32, #tpu.memory_space<vmem>>, vector<16x128xf32>
      tpu.vector_store %arg6[%c0_14, %c0_15], %15 {strides = array<i32>} : memref<16x128xf32, #tpu.memory_space<vmem>>, vector<16x128xf32>,
    } else {
    }
    return
  }
  func.func @transform_0(%arg0: i32, %arg1: i32, %arg2: i32) -> (i32, i32) {
    %c0_i32 = arith.constant 0 : i32
    return %arg0, %arg2 : i32, i32
  }
  func.func @transform_1(%arg0: i32, %arg1: i32, %arg2: i32) -> (i32, i32) {
    %c0_i32 = arith.constant 0 : i32
    return %arg2, %arg1 : i32, i32
  }
  func.func @transform_2(%arg0: i32, %arg1: i32, %arg2: i32) -> (i32, i32) {
    %c0_i32 = arith.constant 0 : i32
    %c0_i32_0 = arith.constant 0 : i32
    return %c0_i32, %arg1 : i32, i32
  }
  func.func @transform_3(%arg0: i32, %arg1: i32, %arg2: i32) -> (i32, i32) {
    %c0_i32 = arith.constant 0 : i32
    return %arg0, %arg1 : i32, i32
  }
}

</mosaic_0001>

<llo_original>
// kernel: custom-call.8
$region0: #{custom-call.8}
  %s0 = inlined_call_operand.vmem [shape: f32[8,16,16], index: 0, kind: output, shape index: {}]

// kernel: _frame_step.3
$region0: #{_frame_step.3}
  #allocation0 [shape = 'u32[]', space=smem, size = 0x4, offset = 0x4, fixed_abs, tag = 'smem constant byte address 0x4 - core index']
  #allocation1 [shape = 'u32[72,128]{1,0:T(1,128)}', space=vmem, size = 0x9000, scoped, tag = 'internal scratch']
  %s0 = inlined_call_operand.vmem [shape: f32[2,1,256], index: 0, kind: input, shape index: {}]
  %s1 = inlined_call_operand.vmem [shape: f32[16,256], index: 1, kind: input, shape index: {}]
  %s2 = inlined_call_operand.vmem [shape: bf16[2,16,256], index: 2, kind: output, shape index: {}]
  %s3 = sld [smem:[#allocation0]]
  $region41: #{_frame_step.3} parent=0
    _
  %s5 = ssub.s32 1, %s3
  %s6 = scalar_select 0, %s5, %s3
  loop: start=0, step=1, limit=4
  $region2: #{_frame_step.3} parent=0 // loop_pre_header
    _
  $region3: #{_frame_step.3} parent=0 // loop_header
    %s8 = sphi 0, %s12
    %p9 = scmp.ge.s32.totalorder %s8, 4
    %s15 = sphi 0, %s27
    %s16 = sphi 0, %s23
    %s17 = sphi 0, %s15
    %s18 = sphi 0, %s16
    %s19 = sphi 0, %s17
    %s20 = sphi 0, %s18
    %s32 = sphi 0, %s34
    %s35 = sphi 0, %s32
    %s36 = sphi 0, %s35
    %s52 = sphi 0, %s36
    %s58 = sphi 0, %s60
    %s61 = sphi 0, %s58
    %s62 = sphi 0, %s61
    %s78 = sphi 0, %s62
    %s86 = sphi 0, %s88
    %s89 = sphi 0, %s86
    %s90 = sphi 0, %s89
    %s106 = sphi 0, %s90
  $region4: #{_frame_step.3} parent=0 // loop_header_branch
    %11 = sbr.rel (%p9) target = $region8
  $region5: #{_frame_step.3} parent=0 // loop_body
    %s13 = ssub.s32 %s8, 1
    %s14 = ssub.s32 %s8, 2
    %s21 = sadd.s32 1, %s16
    %p22 = scmp.ge.s32.totalorder %s21, 2
    %s23 = scalar_select %p22, 0, %s21
    %s24 = sadd.s32 1, %s15
    %s25 = scalar_select %p22, %s24, %s15
    %p26 = scmp.ge.s32.totalorder %s25, 1
    %s27 = scalar_select %p26, 0, %s25
    %s28 = ssub.s32 %s16, %s23
    %s29 = ssub.s32 %s15, %s27
    %s30 = sor.u32 %s28, %s29
    %p31 = scmp.eq.s32.totalorder %s30, 0
    %s33 = sadd.s32 %s32, 1
    %s34 = scalar_select %p31, %s32, %s33
    %p37 = pneg %p31
    %p38 = scmp.eq.s32.totalorder %s8, 1
    %p39 = por %p37, %p38
    %p40 = scmp.ne.s32.totalorder %s32, %s35
    %p41 = scmp.eq.s32.totalorder %s8, 0
    %p42 = por %p40, %p41
    %p43 = scmp.ne.s32.totalorder %s32, %s35
    %p44 = scmp.eq.s32.totalorder %s13, 1
    %p45 = por %p43, %p44
    %p46 = scmp.ne.s32.totalorder %s35, %s36
    %p47 = scmp.eq.s32.totalorder %s13, 0
    %p48 = por %p46, %p47
    %p49 = scmp.ne.s32.totalorder %s35, %s36
    %p50 = scmp.eq.s32.totalorder %s14, 1
    %p51 = por %p49, %p50
    %p53 = scmp.ne.s32.totalorder %s36, %s52
    %p54 = scmp.eq.s32.totalorder %s14, 0
    %p55 = por %p53, %p54
    %s56 = ssub.s32 %s15, %s27
    %p57 = scmp.eq.s32.totalorder %s56, 0
    %s59 = sadd.s32 %s58, 1
    %s60 = scalar_select %p57, %s58, %s59
    %p63 = pneg %p57
    %p64 = scmp.eq.s32.totalorder %s8, 1
    %p65 = por %p63, %p64
    %p66 = scmp.ne.s32.totalorder %s58, %s61
    %p67 = scmp.eq.s32.totalorder %s8, 0
    %p68 = por %p66, %p67
    %p69 = scmp.ne.s32.totalorder %s58, %s61
    %p70 = scmp.eq.s32.totalorder %s13, 1
    %p71 = por %p69, %p70
    %p72 = scmp.ne.s32.totalorder %s61, %s62
    %p73 = scmp.eq.s32.totalorder %s13, 0
    %p74 = por %p72, %p73
    %p75 = scmp.ne.s32.totalorder %s61, %s62
    %p76 = scmp.eq.s32.totalorder %s14, 1
    %p77 = por %p75, %p76
    %p79 = scmp.ne.s32.totalorder %s62, %s78
    %p80 = scmp.eq.s32.totalorder %s14, 0
    %p81 = por %p79, %p80
    %s82 = ssub.s32 %s16, %s23
    %s83 = ssub.s32 %s15, %s27
    %s84 = sor.u32 %s82, %s83
    %p85 = scmp.eq.s32.totalorder %s84, 0
    %s87 = sadd.s32 %s86, 1
    %s88 = scalar_select %p85, %s86, %s87
    %p91 = pneg %p85
    %p92 = scmp.eq.s32.totalorder %s8, 1
    %p93 = por %p91, %p92
    %p94 = scmp.ne.s32.totalorder %s86, %s89
    %p95 = scmp.eq.s32.totalorder %s8, 0
    %p96 = por %p94, %p95
    %p97 = scmp.ne.s32.totalorder %s86, %s89
    %p98 = scmp.eq.s32.totalorder %s13, 1
    %p99 = por %p97, %p98
    %p100 = scmp.ne.s32.totalorder %s89, %s90
    %p101 = scmp.eq.s32.totalorder %s13, 0
    %p102 = por %p100, %p101
    %p103 = scmp.ne.s32.totalorder %s89, %s90
    %p104 = scmp.eq.s32.totalorder %s14, 1
    %p105 = por %p103, %p104
    %p107 = scmp.ne.s32.totalorder %s90, %s106
    %p108 = scmp.eq.s32.totalorder %s14, 0
    %p109 = por %p107, %p108
    %p110 = scmp.le.s32.totalorder 1, %s8
    %p111 = scmp.lt.s32.totalorder %s8, 3
    %p112 = pnand %p110, %p111
    %p113 = pneg %p112
    // Predicated region
    $region9: #{_frame_step.3} parent=5 // pred_check
      _
    $region10: #{_frame_step.3} parent=5 // pred_check_branch
      %115 = sbr.rel (%p112) target = $region12
    $region11: #{_frame_step.3} parent=5 // pred_region
      %s116 = ssub.s32 %s8, 1
      // Predicated region
      $region13: #{_frame_step.3} parent=11 // pred_check
        %p117 = pneg %p74
      $region14: #{_frame_step.3} parent=11 // pred_check_branch
        %119 = sbr.rel (%p117) target = $region16
      $region15: #{_frame_step.3} parent=11 // pred_region
        %s120 = smul.u32 2, %s17
        %p121 = scmp.lt.s32.totalorder %s120, 1
        %s122 = scalar_select %p121, %s120, 1
        %s123 = smul.addr %s122, 8
        %s124 = scalar_lea.vmem %s1, %s123
        %s125 = smul.u32 2, %s17
      $region16: #{_frame_step.3} parent=11 // pred_fallthru
        _
    $region12: #{_frame_step.3} parent=5 // pred_fallthru
      _
    %p126 = scmp.lt.s32.totalorder %s8, 2
    // Predicated region
    $region17: #{_frame_step.3} parent=5 // pred_check
      %p127 = pneg %p126
    $region18: #{_frame_step.3} parent=5 // pred_check_branch
      %129 = sbr.rel (%p127) target = $region20
    $region19: #{_frame_step.3} parent=5 // pred_region
      // Predicated region
      $region21: #{_frame_step.3} parent=19 // pred_check
        %p130 = pneg %p42
      $region22: #{_frame_step.3} parent=19 // pred_check_branch
        %132 = sbr.rel (%p130) target = $region24
      $region23: #{_frame_step.3} parent=19 // pred_region
        %s133 = smul.u32 2, %s15
        %p134 = scmp.lt.s32.totalorder %s16, 1
        %s135 = scalar_select %p134, %s16, 1
        %p136 = scmp.lt.s32.totalorder %s133, 1
        %s137 = scalar_select %p136, %s133, 1
        %s138 = smul.addr %s135, 2
        %s139 = sadd.s32 %s137, %s138
        %s140 = scalar_lea.vmem %s0, %s139
        %s141 = smul.u32 2, %s15
      $region24: #{_frame_step.3} parent=19 // pred_fallthru
        _
    $region20: #{_frame_step.3} parent=5 // pred_fallthru
      _
    %p142 = scmp.le.s32.totalorder 1, %s8
    %p143 = scmp.lt.s32.totalorder %s8, 3
    %p144 = pnand %p142, %p143
    %p145 = pneg %p144
    // Predicated region
    $region25: #{_frame_step.3} parent=5 // pred_check
      _
    $region26: #{_frame_step.3} parent=5 // pred_check_branch
      %147 = sbr.rel (%p144) target = $region28
    $region27: #{_frame_step.3} parent=5 // pred_region
      %s148 = ssub.s32 %s8, 1
      %s149 = smul.u32 2, %s17
      %p150 = scmp.lt.s32.totalorder %s18, 1
      %s151 = scalar_select %p150, %s18, 1
      %p152 = scmp.lt.s32.totalorder %s149, 1
      %s153 = scalar_select %p152, %s149, 1
      %s154 = smul.addr %s151, 2
      %s155 = sadd.s32 %s153, %s154
      %s156 = scalar_lea.vmem %s0, %s155
      %p157 = pneg %p48
      %p158 = pneg %p45
      %s159 = smul.u32 2, %s17
      %p160 = scmp.lt.s32.totalorder %s159, 1
      %s161 = scalar_select %p160, %s159, 1
      %s162 = smul.addr %s161, 8
      %s163 = scalar_lea.vmem %s1, %s162
      %p164 = pneg %p74
      %p165 = pneg %p71
      %p166 = pneg %p102
      %p167 = pneg %p99
      %s168 = smul.u32 2, %s17
      %p169 = scmp.lt.s32.totalorder %s18, 1
      %s170 = scalar_select %p169, %s18, 1
      %p171 = scmp.lt.s32.totalorder %s168, 1
      %s172 = scalar_select %p171, %s168, 1
      %s173 = smul.addr %s170, 4
      %s174 = sadd.s32 %s172, %s173
      %s175 = smul.addr %s174, 4
      %s176 = scalar_lea.vmem %s2, %s175
      %s177 = smul.u32 2, %s17
      %p178 = scmp.lt.s32.totalorder %s18, 1
      %s179 = scalar_select %p178, %s18, 1
      %p180 = scmp.lt.s32.totalorder %s177, 1
      %s181 = scalar_select %p180, %s177, 1
      %s182 = smul.addr %s179, 2
      %s183 = sadd.s32 %s181, %s182
      %s184 = scalar_lea.vmem %s0, %s183
      %s185 = smul.u32 2, %s17
      %s186 = smul.u32 2, %s17
      %p187 = scmp.lt.s32.totalorder %s186, 1
      %s188 = scalar_select %p187, %s186, 1
      %s189 = smul.addr %s188, 8
      %s190 = scalar_lea.vmem %s1, %s189
      %s191 = smul.u32 2, %s17
      %s192 = smul.u32 2, %s17
      %p193 = scmp.lt.s32.totalorder %s18, 1
      %s194 = scalar_select %p193, %s18, 1
      %p195 = scmp.lt.s32.totalorder %s192, 1
      %s196 = scalar_select %p195, %s192, 1
      %s197 = smul.addr %s194, 4
      %s198 = sadd.s32 %s196, %s197
      %s199 = smul.addr %s198, 4
      %s200 = scalar_lea.vmem %s2, %s199
      %s201 = smul.u32 2, %s17
      %v202 = vld [vmem:[%s184] sm:$0x3]
      %v203 = vmul.f32 %v202, 1.442695
      %v204 = vpow.pop %v203
      %v205 = vld [vmem:[%s190] sm:$0xff]
      %v206 = vld [vmem:[%s190 + $0x8] sm:$0xff]
      %v207 = vld [vmem:[%s190 + $0x10] sm:$0xff]
      %v208 = vld [vmem:[%s190 + $0x18] sm:$0xff]
      %v210 = vperm.slane %v204, 0
      %v211 = vperm.slane %v204, 1
      %v214 = vmul.f32 %v210, %v205
      %v215 = vmul.f32 %v211, %v206
      %v216 = vmul.f32 %v210, %v207
      %v217 = vmul.f32 %v211, %v208
      %v218 = vpack.c.bf16 %v215, %v214
      %v219 = vpack.c.bf16 %v217, %v216
      %220 = vst [vmem:[%s200] sm:$0xff] %v218
      %221 = vst [vmem:[%s200 + $0x8] sm:$0xff] %v219
      %s222 = smul.u32 2, %s17
      %p223 = scmp.lt.s32.totalorder %s18, 1
      %s224 = scalar_select %p223, %s18, 1
      %p225 = scmp.lt.s32.totalorder %s222, 1
      %s226 = scalar_select %p225, %s222, 1
      %s227 = smul.addr %s224, 4
      %s228 = sadd.s32 %s226, %s227
      %s229 = smul.addr %s228, 4
      %s230 = scalar_lea.vmem %s2, %s229
      // Predicated region
      $region29: #{_frame_step.3} parent=27 // pred_check
        %p231 = pneg %p99
      $region30: #{_frame_step.3} parent=27 // pred_check_branch
        %233 = sbr.rel (%p231) target = $region32
      $region31: #{_frame_step.3} parent=27 // pred_region
        %s234 = smul.u32 2, %s17
      $region32: #{_frame_step.3} parent=27 // pred_fallthru
        _
    $region28: #{_frame_step.3} parent=5 // pred_fallthru
      _
    %p235 = scmp.le.s32.totalorder 2, %s8
    // Predicated region
    $region33: #{_frame_step.3} parent=5 // pred_check
      %p236 = pneg %p235
    $region34: #{_frame_step.3} parent=5 // pred_check_branch
      %238 = sbr.rel (%p236) target = $region36
    $region35: #{_frame_step.3} parent=5 // pred_region
      %s239 = ssub.s32 %s8, 2
      // Predicated region
      $region37: #{_frame_step.3} parent=35 // pred_check
        %p240 = pneg %p105
      $region38: #{_frame_step.3} parent=35 // pred_check_branch
        %242 = sbr.rel (%p240) target = $region40
      $region39: #{_frame_step.3} parent=35 // pred_region
        %s243 = smul.u32 2, %s19
        %p244 = scmp.lt.s32.totalorder %s20, 1
        %s245 = scalar_select %p244, %s20, 1
        %p246 = scmp.lt.s32.totalorder %s243, 1
        %s247 = scalar_select %p246, %s243, 1
        %s248 = smul.addr %s245, 4
        %s249 = sadd.s32 %s247, %s248
        %s250 = smul.addr %s249, 4
        %s251 = scalar_lea.vmem %s2, %s250
      $region40: #{_frame_step.3} parent=35 // pred_fallthru
        _
    $region36: #{_frame_step.3} parent=5 // pred_fallthru
      _
  $region6: #{_frame_step.3} parent=0 // loop_footer
    %s12 = sadd.s32 1, %s8
  $region7: #{_frame_step.3} parent=0 // loop_footer_branch
    %7 = sbr.rel target = $region3
  $region8: #{_frame_step.3} parent=0 // loop_exit
    _

// kernel: _frame_step.5
$region0: #{_frame_step.5}
  #allocation0 [shape = 'u32[]', space=smem, size = 0x4, offset = 0x4, fixed_abs, tag = 'smem constant byte address 0x4 - core index']
  #allocation1 [shape = 'u32[72,128]{1,0:T(1,128)}', space=vmem, size = 0x9000, scoped, tag = 'internal scratch']
  #allocation2 [shape = 'f32[16,128]{1,0:T(8,128)}', space=vmem, size = 0x2000, scoped, tag = 'scratch operand']
  %s0 = inlined_call_operand.vmem [shape: bf16[16,128], index: 0, kind: input, shape index: {}]
  %s1 = inlined_call_operand.vmem [shape: bf16[128,128], index: 1, kind: input, shape index: {}]
  %s2 = inlined_call_operand.vmem [shape: f32[1,128], index: 2, kind: input, shape index: {}]
  %s3 = inlined_call_operand.vmem [shape: f32[16,128], index: 3, kind: output, shape index: {}]
  %s4 = sld [smem:[#allocation0]]
  $region30: #{_frame_step.5} parent=0
    _
  %s6 = ssub.s32 1, %s4
  %s7 = scalar_select 0, %s6, %s4
  // Predicated region
  $region2: #{_frame_step.5} parent=0 // pred_check
    _
  $region3: #{_frame_step.5} parent=0 // pred_check_branch
    %9 = sbr.rel (0) target = $region5
  $region4: #{_frame_step.5} parent=0 // pred_region
    _
  $region5: #{_frame_step.5} parent=0 // pred_fallthru
    _
  // Predicated region
  $region6: #{_frame_step.5} parent=0 // pred_check
    _
  $region7: #{_frame_step.5} parent=0 // pred_check_branch
    %11 = sbr.rel (0) target = $region9
  $region8: #{_frame_step.5} parent=0 // pred_region
    _
  $region9: #{_frame_step.5} parent=0 // pred_fallthru
    _
  // Predicated region
  $region10: #{_frame_step.5} parent=0 // pred_check
    _
  $region11: #{_frame_step.5} parent=0 // pred_check_branch
    %13 = sbr.rel (0) target = $region13
  $region12: #{_frame_step.5} parent=0 // pred_region
    _
  $region13: #{_frame_step.5} parent=0 // pred_fallthru
    _
  %p14 = scmp.eq.s32.totalorder 0, 0
  // Predicated region
  $region14: #{_frame_step.5} parent=0 // pred_check
    %p15 = pneg %p14
  $region15: #{_frame_step.5} parent=0 // pred_check_branch
    %17 = sbr.rel (%p15) target = $region17
  $region16: #{_frame_step.5} parent=0 // pred_region
    %18 = vst [vmem:[#allocation2] sm:$0xff] 0.0
    %19 = vst [vmem:[#allocation2 + $0x8] sm:$0xff] 0.0
  $region17: #{_frame_step.5} parent=0 // pred_fallthru
    _
  %v20 = vld [vmem:[#allocation2] sm:$0xff]
  %v21 = vld [vmem:[#allocation2 + $0x8] sm:$0xff]
  %v22 = vld [vmem:[%s0] sm:$0xf]
  %v23 = vld [vmem:[%s0 + $0x4] sm:$0xf]
  %v24 = vld [vmem:[%s1] sm:$0xf]
  %v25 = vld [vmem:[%s1 + $0x4] sm:$0xf]
  %v26 = vld [vmem:[%s1 + $0x8] sm:$0xf]
  %v27 = vld [vmem:[%s1 + $0xc] sm:$0xf]
  %v28 = vld [vmem:[%s1 + $0x10] sm:$0xf]
  %v29 = vld [vmem:[%s1 + $0x14] sm:$0xf]
  %v30 = vld [vmem:[%s1 + $0x18] sm:$0xf]
  %v31 = vld [vmem:[%s1 + $0x1c] sm:$0xf]
  %v32 = vld [vmem:[%s1 + $0x20] sm:$0xf]
  %v33 = vld [vmem:[%s1 + $0x24] sm:$0xf]
  %v34 = vld [vmem:[%s1 + $0x28] sm:$0xf]
  %v35 = vld [vmem:[%s1 + $0x2c] sm:$0xf]
  %v36 = vld [vmem:[%s1 + $0x30] sm:$0xf]
  %v37 = vld [vmem:[%s1 + $0x34] sm:$0xf]
  %v38 = vld [vmem:[%s1 + $0x38] sm:$0xf]
  %v39 = vld [vmem:[%s1 + $0x3c] sm:$0xf]
  %v42 = vunpack.c.l.b16 %v22
  %v43 = vunpack.c.l.b16 %v23
  %v44 = vpack.c.b16 %v43, %v42
  %v62 = vunpack.c.l.b16 %v24
  %v63 = vunpack.c.l.b16 %v25
  %v64 = vunpack.c.l.b16 %v26
  %v65 = vunpack.c.l.b16 %v27
  %v66 = vunpack.c.l.b16 %v28
  %v67 = vunpack.c.l.b16 %v29
  %v68 = vunpack.c.l.b16 %v30
  %v69 = vunpack.c.l.b16 %v31
  %v70 = vunpack.c.l.b16 %v32
  %v71 = vunpack.c.l.b16 %v33
  %v72 = vunpack.c.l.b16 %v34
  %v73 = vunpack.c.l.b16 %v35
  %v74 = vunpack.c.l.b16 %v36
  %v75 = vunpack.c.l.b16 %v37
  %v76 = vunpack.c.l.b16 %v38
  %v77 = vunpack.c.l.b16 %v39
  %v78 = vpack.c.b16 %v63, %v62
  %v79 = vpack.c.b16 %v65, %v64
  %v80 = vpack.c.b16 %v67, %v66
  %v81 = vpack.c.b16 %v69, %v68
  %v82 = vpack.c.b16 %v71, %v70
  %v83 = vpack.c.b16 %v73, %v72
  %v84 = vpack.c.b16 %v75, %v74
  %v85 = vpack.c.b16 %v77, %v76
  %94 = vmatpush.bf16.msra.mxu0 %v85
  %95 = vmatpush.bf16.msra.mxu0 %v84
  %96 = vmatpush.bf16.msra.mxu0 %v83
  %97 = vmatpush.bf16.msra.mxu0 %v82
  %98 = vmatpush.bf16.msra.mxu0 %v81
  %99 = vmatpush.bf16.msra.mxu0 %v80
  %100 = vmatpush.bf16.msra.mxu0 %v79
  %101 = vmatpush.bf16.msra.mxu0 %v78
  %102 = vmatmul.bf16.gmra.mxu0 %v44
  %v103 = vpop.f32.mrf.mxu0
  %v104 = vadd.f32 0.0, %v103
  %v105 = vpop.f32.mrf.mxu0
  %v106 = vadd.f32 0.0, %v105
  %107 = vdwg.mxu0
  %v108 = vadd.f32 %v20, %v104
  %v109 = vadd.f32 %v21, %v106
  %110 = vst [vmem:[#allocation2] sm:$0xff] %v108
  %111 = vst [vmem:[#allocation2 + $0x8] sm:$0xff] %v109
  // Predicated region
  $region18: #{_frame_step.5} parent=0 // pred_check
    %p112 = pneg %p14
  $region19: #{_frame_step.5} parent=0 // pred_check_branch
    %114 = sbr.rel (%p112) target = $region21
  $region20: #{_frame_step.5} parent=0 // pred_region
    %v115 = vld [vmem:[#allocation2] sm:$0xff]
    %v116 = vld [vmem:[#allocation2 + $0x8] sm:$0xff]
    %v117 = vld [vmem:[%s2] sm:$0x1]
    %v119 = vperm.slane %v117, 0
    %v121 = vadd.f32 %v115, %v119
    %v122 = vadd.f32 %v116, %v119
    %123 = vst [vmem:[%s3] sm:$0xff] %v121
    %124 = vst [vmem:[%s3 + $0x8] sm:$0xff] %v122
  $region21: #{_frame_step.5} parent=0 // pred_fallthru
    _
  // Predicated region
  $region22: #{_frame_step.5} parent=0 // pred_check
    _
  $region23: #{_frame_step.5} parent=0 // pred_check_branch
    %126 = sbr.rel (0) target = $region25
  $region24: #{_frame_step.5} parent=0 // pred_region
    _
  $region25: #{_frame_step.5} parent=0 // pred_fallthru
    _
  // Predicated region
  $region26: #{_frame_step.5} parent=0 // pred_check
    _
  $region27: #{_frame_step.5} parent=0 // pred_check_branch
    %128 = sbr.rel (0) target = $region29
  $region28: #{_frame_step.5} parent=0 // pred_region
    _
  $region29: #{_frame_step.5} parent=0 // pred_fallthru
    _

// kernel: _frame_step.4
$region0: #{_frame_step.4}
  #allocation0 [shape = 'u32[]', space=smem, size = 0x4, offset = 0x4, fixed_abs, tag = 'smem constant byte address 0x4 - core index']
  #allocation1 [shape = 'u32[72,128]{1,0:T(1,128)}', space=vmem, size = 0x9000, scoped, tag = 'internal scratch']
  #allocation2 [shape = 'f32[16,128]{1,0:T(8,128)}', space=vmem, size = 0x2000, scoped, tag = 'scratch operand']
  %s0 = inlined_call_operand.vmem [shape: bf16[16,256], index: 0, kind: input, shape index: {}]
  %s1 = inlined_call_operand.vmem [shape: bf16[256,128], index: 1, kind: input, shape index: {}]
  %s2 = inlined_call_operand.vmem [shape: f32[1,128], index: 2, kind: input, shape index: {}]
  %s3 = inlined_call_operand.vmem [shape: bf16[128,128], index: 3, kind: input, shape index: {}]
  %s4 = inlined_call_operand.vmem [shape: f32[1,128], index: 4, kind: input, shape index: {}]
  %s5 = inlined_call_operand.vmem [shape: bf16[16,128], index: 5, kind: output, shape index: {}]
  %s6 = sld [smem:[#allocation0]]
  $region38: #{_frame_step.4} parent=0
    _
  %s8 = ssub.s32 1, %s6
  %s9 = scalar_select 0, %s8, %s6
  // Predicated region
  $region2: #{_frame_step.4} parent=0 // pred_check
    _
  $region3: #{_frame_step.4} parent=0 // pred_check_branch
    %11 = sbr.rel (0) target = $region5
  $region4: #{_frame_step.4} parent=0 // pred_region
    _
  $region5: #{_frame_step.4} parent=0 // pred_fallthru
    _
  // Predicated region
  $region6: #{_frame_step.4} parent=0 // pred_check
    _
  $region7: #{_frame_step.4} parent=0 // pred_check_branch
    %13 = sbr.rel (0) target = $region9
  $region8: #{_frame_step.4} parent=0 // pred_region
    _
  $region9: #{_frame_step.4} parent=0 // pred_fallthru
    _
  // Predicated region
  $region10: #{_frame_step.4} parent=0 // pred_check
    _
  $region11: #{_frame_step.4} parent=0 // pred_check_branch
    %15 = sbr.rel (0) target = $region13
  $region12: #{_frame_step.4} parent=0 // pred_region
    _
  $region13: #{_frame_step.4} parent=0 // pred_fallthru
    _
  // Predicated region
  $region14: #{_frame_step.4} parent=0 // pred_check
    _
  $region15: #{_frame_step.4} parent=0 // pred_check_branch
    %17 = sbr.rel (0) target = $region17
  $region16: #{_frame_step.4} parent=0 // pred_region
    _
  $region17: #{_frame_step.4} parent=0 // pred_fallthru
    _
  // Predicated region
  $region18: #{_frame_step.4} parent=0 // pred_check
    _
  $region19: #{_frame_step.4} parent=0 // pred_check_branch
    %19 = sbr.rel (0) target = $region21
  $region20: #{_frame_step.4} parent=0 // pred_region
    _
  $region21: #{_frame_step.4} parent=0 // pred_fallthru
    _
  %p20 = scmp.eq.s32.totalorder 0, 0
  // Predicated region
  $region22: #{_frame_step.4} parent=0 // pred_check
    %p21 = pneg %p20
  $region23: #{_frame_step.4} parent=0 // pred_check_branch
    %23 = sbr.rel (%p21) target = $region25
  $region24: #{_frame_step.4} parent=0 // pred_region
    %24 = vst [vmem:[#allocation2] sm:$0xff] 0.0
    %25 = vst [vmem:[#allocation2 + $0x8] sm:$0xff] 0.0
  $region25: #{_frame_step.4} parent=0 // pred_fallthru
    _
  %v26 = vld [vmem:[#allocation2] sm:$0xff]
  %v27 = vld [vmem:[#allocation2 + $0x8] sm:$0xff]
  %v28 = vld [vmem:[%s0] sm:$0xff]
  %v29 = vld [vmem:[%s0 + $0x8] sm:$0xff]
  %v30 = vld [vmem:[%s1] sm:$0xf]
  %v31 = vld [vmem:[%s1 + $0x4] sm:$0xf]
  %v32 = vld [vmem:[%s1 + $0x8] sm:$0xf]
  %v33 = vld [vmem:[%s1 + $0xc] sm:$0xf]
  %v34 = vld [vmem:[%s1 + $0x10] sm:$0xf]
  %v35 = vld [vmem:[%s1 + $0x14] sm:$0xf]
  %v36 = vld [vmem:[%s1 + $0x18] sm:$0xf]
  %v37 = vld [vmem:[%s1 + $0x1c] sm:$0xf]
  %v38 = vld [vmem:[%s1 + $0x20] sm:$0xf]
  %v39 = vld [vmem:[%s1 + $0x24] sm:$0xf]
  %v40 = vld [vmem:[%s1 + $0x28] sm:$0xf]
  %v41 = vld [vmem:[%s1 + $0x2c] sm:$0xf]
  %v42 = vld [vmem:[%s1 + $0x30] sm:$0xf]
  %v43 = vld [vmem:[%s1 + $0x34] sm:$0xf]
  %v44 = vld [vmem:[%s1 + $0x38] sm:$0xf]
  %v45 = vld [vmem:[%s1 + $0x3c] sm:$0xf]
  %v46 = vld [vmem:[%s1 + $0x40] sm:$0xf]
  %v47 = vld [vmem:[%s1 + $0x44] sm:$0xf]
  %v48 = vld [vmem:[%s1 + $0x48] sm:$0xf]
  %v49 = vld [vmem:[%s1 + $0x4c] sm:$0xf]
  %v50 = vld [vmem:[%s1 + $0x50] sm:$0xf]
  %v51 = vld [vmem:[%s1 + $0x54] sm:$0xf]
  %v52 = vld [vmem:[%s1 + $0x58] sm:$0xf]
  %v53 = vld [vmem:[%s1 + $0x5c] sm:$0xf]
  %v54 = vld [vmem:[%s1 + $0x60] sm:$0xf]
  %v55 = vld [vmem:[%s1 + $0x64] sm:$0xf]
  %v56 = vld [vmem:[%s1 + $0x68] sm:$0xf]
  %v57 = vld [vmem:[%s1 + $0x6c] sm:$0xf]
  %v58 = vld [vmem:[%s1 + $0x70] sm:$0xf]
  %v59 = vld [vmem:[%s1 + $0x74] sm:$0xf]
  %v60 = vld [vmem:[%s1 + $0x78] sm:$0xf]
  %v61 = vld [vmem:[%s1 + $0x7c] sm:$0xf]
  %v64 = vunpack.c.l.b16 %v28
  %v65 = vunpack.c.h.b16 %v28
  %v66 = vunpack.c.l.b16 %v29
  %v67 = vunpack.c.h.b16 %v29
  %v68 = vpack.c.b16 %v66, %v64
  %v69 = vpack.c.b16 %v67, %v65
  %v104 = vunpack.c.l.b16 %v30
  %v105 = vunpack.c.l.b16 %v31
  %v106 = vunpack.c.l.b16 %v32
  %v107 = vunpack.c.l.b16 %v33
  %v108 = vunpack.c.l.b16 %v34
  %v109 = vunpack.c.l.b16 %v35
  %v110 = vunpack.c.l.b16 %v36
  %v111 = vunpack.c.l.b16 %v37
  %v112 = vunpack.c.l.b16 %v38
  %v113 = vunpack.c.l.b16 %v39
  %v114 = vunpack.c.l.b16 %v40
  %v115 = vunpack.c.l.b16 %v41
  %v116 = vunpack.c.l.b16 %v42
  %v117 = vunpack.c.l.b16 %v43
  %v118 = vunpack.c.l.b16 %v44
  %v119 = vunpack.c.l.b16 %v45
  %v120 = vunpack.c.l.b16 %v46
  %v121 = vunpack.c.l.b16 %v47
  %v122 = vunpack.c.l.b16 %v48
  %v123 = vunpack.c.l.b16 %v49
  %v124 = vunpack.c.l.b16 %v50
  %v125 = vunpack.c.l.b16 %v51
  %v126 = vunpack.c.l.b16 %v52
  %v127 = vunpack.c.l.b16 %v53
  %v128 = vunpack.c.l.b16 %v54
  %v129 = vunpack.c.l.b16 %v55
  %v130 = vunpack.c.l.b16 %v56
  %v131 = vunpack.c.l.b16 %v57
  %v132 = vunpack.c.l.b16 %v58
  %v133 = vunpack.c.l.b16 %v59
  %v134 = vunpack.c.l.b16 %v60
  %v135 = vunpack.c.l.b16 %v61
  %v136 = vpack.c.b16 %v105, %v104
  %v137 = vpack.c.b16 %v107, %v106
  %v138 = vpack.c.b16 %v109, %v108
  %v139 = vpack.c.b16 %v111, %v110
  %v140 = vpack.c.b16 %v113, %v112
  %v141 = vpack.c.b16 %v115, %v114
  %v142 = vpack.c.b16 %v117, %v116
  %v143 = vpack.c.b16 %v119, %v118
  %v144 = vpack.c.b16 %v121, %v120
  %v145 = vpack.c.b16 %v123, %v122
  %v146 = vpack.c.b16 %v125, %v124
  %v147 = vpack.c.b16 %v127, %v126
  %v148 = vpack.c.b16 %v129, %v128
  %v149 = vpack.c.b16 %v131, %v130
  %v150 = vpack.c.b16 %v133, %v132
  %v151 = vpack.c.b16 %v135, %v134
  %168 = vmatpush.bf16.msra.mxu0 %v143
  %169 = vmatpush.bf16.msra.mxu0 %v142
  %170 = vmatpush.bf16.msra.mxu0 %v141
  %171 = vmatpush.bf16.msra.mxu0 %v140
  %172 = vmatpush.bf16.msra.mxu0 %v139
  %173 = vmatpush.bf16.msra.mxu0 %v138
  %174 = vmatpush.bf16.msra.mxu0 %v137
  %175 = vmatpush.bf16.msra.mxu0 %v136
  %176 = vmatmul.bf16.gmra.mxu0 %v68
  %v177 = vpop.f32.mrf.mxu0
  %v178 = vadd.f32 0.0, %v177
  %v179 = vpop.f32.mrf.mxu0
  %v180 = vadd.f32 0.0, %v179
  %181 = vdwg.mxu0
  %182 = vmatpush.bf16.msra.mxu0 %v151
  %183 = vmatpush.bf16.msra.mxu0 %v150
  %184 = vmatpush.bf16.msra.mxu0 %v149
  %185 = vmatpush.bf16.msra.mxu0 %v148
  %186 = vmatpush.bf16.msra.mxu0 %v147
  %187 = vmatpush.bf16.msra.mxu0 %v146
  %188 = vmatpush.bf16.msra.mxu0 %v145
  %189 = vmatpush.bf16.msra.mxu0 %v144
  %190 = vmatmul.bf16.gmra.mxu0 %v69
  %v191 = vpop.f32.mrf.mxu0
  %v192 = vadd.f32 %v178, %v191
  %v193 = vpop.f32.mrf.mxu0
  %v194 = vadd.f32 %v180, %v193
  %195 = vdwg.mxu0
  %v196 = vadd.f32 %v26, %v192
  %v197 = vadd.f32 %v27, %v194
  %198 = vst [vmem:[#allocation2] sm:$0xff] %v196
  %199 = vst [vmem:[#allocation2 + $0x8] sm:$0xff] %v197
  // Predicated region
  $region26: #{_frame_step.4} parent=0 // pred_check
    %p200 = pneg %p20
  $region27: #{_frame_step.4} parent=0 // pred_check_branch
    %202 = sbr.rel (%p200) target = $region29
  $region28: #{_frame_step.4} parent=0 // pred_region
    %v203 = vld [vmem:[#allocation2] sm:$0xff]
    %v204 = vld [vmem:[#allocation2 + $0x8] sm:$0xff]
    %v205 = vld [vmem:[%s2] sm:$0x1]
    %v207 = vperm.slane %v205, 0
    %v209 = vadd.f32 %v203, %v207
    %v210 = vadd.f32 %v204, %v207
    %v211 = vmax.f32 %v209, 0.0
    %v212 = vmax.f32 %v210, 0.0
    %v213 = vpack.c.bf16 %v212, %v211
    %v214 = vld [vmem:[%s3] sm:$0xf]
    %v215 = vld [vmem:[%s3 + $0x4] sm:$0xf]
    %v216 = vld [vmem:[%s3 + $0x8] sm:$0xf]
    %v217 = vld [vmem:[%s3 + $0xc] sm:$0xf]
    %v218 = vld [vmem:[%s3 + $0x10] sm:$0xf]
    %v219 = vld [vmem:[%s3 + $0x14] sm:$0xf]
    %v220 = vld [vmem:[%s3 + $0x18] sm:$0xf]
    %v221 = vld [vmem:[%s3 + $0x1c] sm:$0xf]
    %v222 = vld [vmem:[%s3 + $0x20] sm:$0xf]
    %v223 = vld [vmem:[%s3 + $0x24] sm:$0xf]
    %v224 = vld [vmem:[%s3 + $0x28] sm:$0xf]
    %v225 = vld [vmem:[%s3 + $0x2c] sm:$0xf]
    %v226 = vld [vmem:[%s3 + $0x30] sm:$0xf]
    %v227 = vld [vmem:[%s3 + $0x34] sm:$0xf]
    %v228 = vld [vmem:[%s3 + $0x38] sm:$0xf]
    %v229 = vld [vmem:[%s3 + $0x3c] sm:$0xf]
    %v230 = vld [vmem:[%s4] sm:$0x1]
    %v232 = vperm.slane %v230, 0
    %v250 = vunpack.c.l.b16 %v214
    %v251 = vunpack.c.l.b16 %v215
    %v252 = vunpack.c.l.b16 %v216
    %v253 = vunpack.c.l.b16 %v217
    %v254 = vunpack.c.l.b16 %v218
    %v255 = vunpack.c.l.b16 %v219
    %v256 = vunpack.c.l.b16 %v220
    %v257 = vunpack.c.l.b16 %v221
    %v258 = vunpack.c.l.b16 %v222
    %v259 = vunpack.c.l.b16 %v223
    %v260 = vunpack.c.l.b16 %v224
    %v261 = vunpack.c.l.b16 %v225
    %v262 = vunpack.c.l.b16 %v226
    %v263 = vunpack.c.l.b16 %v227
    %v264 = vunpack.c.l.b16 %v228
    %v265 = vunpack.c.l.b16 %v229
    %v266 = vpack.c.b16 %v251, %v250
    %v267 = vpack.c.b16 %v253, %v252
    %v268 = vpack.c.b16 %v255, %v254
    %v269 = vpack.c.b16 %v257, %v256
    %v270 = vpack.c.b16 %v259, %v258
    %v271 = vpack.c.b16 %v261, %v260
    %v272 = vpack.c.b16 %v263, %v262
    %v273 = vpack.c.b16 %v265, %v264
    %282 = vmatpush.bf16.msra.mxu0 %v273
    %283 = vmatpush.bf16.msra.mxu0 %v272
    %284 = vmatpush.bf16.msra.mxu0 %v271
    %285 = vmatpush.bf16.msra.mxu0 %v270
    %286 = vmatpush.bf16.msra.mxu0 %v269
    %287 = vmatpush.bf16.msra.mxu0 %v268
    %288 = vmatpush.bf16.msra.mxu0 %v267
    %289 = vmatpush.bf16.msra.mxu0 %v266
    %290 = vmatmul.bf16.gmra.mxu0 %v213
    %v291 = vpop.f32.mrf.mxu0
    %v292 = vadd.f32 %v232, %v291
    %v293 = vpop.f32.mrf.mxu0
    %v294 = vadd.f32 %v232, %v293
    %295 = vdwg.mxu0
    %v296 = vmax.f32 %v292, 0.0
    %v297 = vmax.f32 %v294, 0.0
    %v298 = vpack.c.bf16 %v296, %v296
    %v299 = vpack.c.bf16 %v297, %v297
    %300 = vst [vmem:[%s5] sm:$0xf] %v298
    %301 = vst [vmem:[%s5 + $0x4] sm:$0xf] %v299
  $region29: #{_frame_step.4} parent=0 // pred_fallthru
    _
  // Predicated region
  $region30: #{_frame_step.4} parent=0 // pred_check
    _
  $region31: #{_frame_step.4} parent=0 // pred_check_branch
    %303 = sbr.rel (0) target = $region33
  $region32: #{_frame_step.4} parent=0 // pred_region
    _
  $region33: #{_frame_step.4} parent=0 // pred_fallthru
    _
  // Predicated region
  $region34: #{_frame_step.4} parent=0 // pred_check
    _
  $region35: #{_frame_step.4} parent=0 // pred_check_branch
    %305 = sbr.rel (0) target = $region37
  $region36: #{_frame_step.4} parent=0 // pred_region
    _
  $region37: #{_frame_step.4} parent=0 // pred_fallthru
    _

</llo_original>
